<compile_context>
chip_gen: v7x
topology: tpu7x:2x2x1
jax: 0.10.0
libtpu: 0.0.40
codegen_flags: <defaults>
</compile_context>

<pallas_src>
import functools

import jax
import jax.numpy as jnp
import numpy as np
from jax import lax
from jax.experimental import pallas as pl
from jax.experimental.pallas import tpu as pltpu

_VMEM_LIMIT = 32 * 1024 * 1024  # conservative scoped-VMEM budget, safe on v5e/v6e/v7x


# ----------------------------------------------------------------------------
# Tiling helpers
# ----------------------------------------------------------------------------
def _pick_tile(dim, cap, align):
    """Largest tile <= cap that is a multiple of `align` and divides `dim`.
    Falls back to the full dim (block == full array extent is always legal)."""
    if dim <= cap:
        return dim
    t = (cap // align) * align
    while t >= align:
        if dim % t == 0:
            return t
        t -= align
    return dim


def _largest_divisor(n, cap):
    c = max(1, min(n, cap))
    while n % c:
        c -= 1
    return c


# ----------------------------------------------------------------------------
# Kernel 1: tiled linear layer  y = x @ W + b   (W already laid out (in, out))
# ----------------------------------------------------------------------------
def _linear_kernel(x_ref, w_ref, b_ref, o_ref, acc_ref):
    @pl.when(pl.program_id(2) == 0)
    def _():
        acc_ref[...] = jnp.zeros_like(acc_ref)

    acc_ref[...] += jnp.dot(x_ref[...], w_ref[...],
                            preferred_element_type=jnp.float32)

    @pl.when(pl.program_id(2) == pl.num_programs(2) - 1)
    def _():
        o_ref[...] = (acc_ref[...] + b_ref[...]).astype(o_ref.dtype)


def linear(x, w, b, *, tm_cap=256, tn_cap=256, tk_cap=512):
    """x: (M, K); w: (K, N) (pre-transposed); b: (N,). Returns (M, N)."""
    M, K = x.shape
    Kw, N = w.shape
    assert K == Kw
    tm = _pick_tile(M, tm_cap, 8)
    tn = _pick_tile(N, tn_cap, 128)
    tk = _pick_tile(K, tk_cap, 128)
    grid = (M // tm, N // tn, K // tk)
    b2 = b.reshape(1, N)
    return pl.pallas_call(
        _linear_kernel,
        out_shape=jax.ShapeDtypeStruct((M, N), x.dtype),
        grid_spec=pltpu.PrefetchScalarGridSpec(
            num_scalar_prefetch=0,
            grid=grid,
            in_specs=[
                pl.BlockSpec((tm, tk), lambda i, j, k: (i, k)),
                pl.BlockSpec((tk, tn), lambda i, j, k: (k, j)),
                pl.BlockSpec((1, tn), lambda i, j, k: (0, j)),
            ],
            out_specs=pl.BlockSpec((tm, tn), lambda i, j, k: (i, j)),
            scratch_shapes=[pltpu.VMEM((tm, tn), jnp.float32)],
        ),
        compiler_params=pltpu.CompilerParams(
            dimension_semantics=("parallel", "parallel", "arbitrary"),
            vmem_limit_bytes=_VMEM_LIMIT,
        ),
    )(x, w, b2)


# ----------------------------------------------------------------------------
# Kernel 2: scaled dot-product attention, a group of heads per grid step
# ----------------------------------------------------------------------------
def _attention_kernel(*refs, inv_scale, has_mask):
    if has_mask:
        q_ref, k_ref, v_ref, m_ref, o_ref = refs
    else:
        q_ref, k_ref, v_ref, o_ref = refs

    # Scale folded into Q: Hb*Qs*d multiplies instead of Hb*Qs*Ks divides.
    q = q_ref[...].astype(jnp.float32) * inv_scale        # (Hb, Qs, d)
    k = k_ref[...].astype(jnp.float32)                    # (Hb, Ks, d)
    v = v_ref[...].astype(jnp.float32)                    # (Hb, Ks, d)

    # Batched over heads, contract d directly (no explicit K transpose).
    s = lax.dot_general(q, k, (((2,), (2,)), ((0,), (0,))),
                        preferred_element_type=jnp.float32)   # (Hb, Qs, Ks)

    if has_mask:
        # masked_fill(mask == 0, -1e9); mask shared across batch & heads.
        s = jnp.where(m_ref[...][None, :, :] != 0, s, jnp.float32(-1e9))

    # Numerically-stable softmax over keys.
    s = s - jnp.max(s, axis=-1, keepdims=True)
    p = jnp.exp(s)
    denom = jnp.sum(p, axis=-1, keepdims=True)
    r = pl.reciprocal(denom, approx=True)   # EUP slot (otherwise idle)
    r = r * (2.0 - denom * r)               # one Newton step -> ~f32 accuracy
    p = p * r

    o = lax.dot_general(p, v, (((2,), (1,)), ((0,), (0,))),
                        preferred_element_type=jnp.float32)   # (Hb, Qs, d)
    o_ref[...] = o.astype(o_ref.dtype)


def _pick_head_block(BH, Qs, Ks, d, budget_bytes=8 * 1024 * 1024):
    # Rough per-head VMEM (inputs double-buffered + score matrix), f32.
    per_head = (Qs * d + 2 * Ks * d + Qs * Ks) * 4 * 2
    cap = max(1, budget_bytes // max(per_head, 1))
    return _largest_divisor(BH, min(cap, 16))


def scaled_dot_product_attention(q, k, v, mask, head_dim):
    """q: (BH, Qs, d); k/v: (BH, Ks, d); mask: (Qs, Ks) or None. -> (BH, Qs, d)."""
    BH, Qs, d = q.shape
    Ks = k.shape[1]
    hb = _pick_head_block(BH, Qs, Ks, d)
    grid = (BH // hb,)
    inv_scale = 1.0 / (float(head_dim) ** 0.5)

    kernel = functools.partial(_attention_kernel, inv_scale=inv_scale,
                               has_mask=mask is not None)
    in_specs = [
        pl.BlockSpec((hb, Qs, d), lambda i: (i, 0, 0)),
        pl.BlockSpec((hb, Ks, d), lambda i: (i, 0, 0)),
        pl.BlockSpec((hb, Ks, d), lambda i: (i, 0, 0)),
    ]
    args = [q, k, v]
    if mask is not None:
        in_specs.append(pl.BlockSpec((Qs, Ks), lambda i: (0, 0)))
        args.append(mask.astype(jnp.float32))

    return pl.pallas_call(
        kernel,
        out_shape=jax.ShapeDtypeStruct((BH, Qs, d), q.dtype),
        grid=grid,
        in_specs=in_specs,
        out_specs=pl.BlockSpec((hb, Qs, d), lambda i: (i, 0, 0)),
        compiler_params=pltpu.CompilerParams(
            dimension_semantics=("parallel",),
            vmem_limit_bytes=_VMEM_LIMIT,
        ),
    )(*args)


# ----------------------------------------------------------------------------
# Parameter preparation (one-time): transpose + fuse projection weights
# ----------------------------------------------------------------------------
def prepare_params(params):
    """Convert PyTorch-layout params (out,in) into kernel-friendly layout:
    weights transposed to (in,out), Q/K/V (and K/V) weights pre-concatenated
    along the output dim so fused projections need a single matmul."""
    wq, wk, wv = params["wq_w"], params["wk_w"], params["wv_w"]
    bq, bk, bv = params["wq_b"], params["wk_b"], params["wv_b"]
    prep = {
        "embed_dim": int(wq.shape[0]),
        "wq": wq.T, "bq": bq,
        "wk": wk.T, "bk": bk,
        "wv": wv.T, "bv": bv,
    }
    if wq.shape[1] == wk.shape[1] == wv.shape[1]:
        prep["wqkv"] = jnp.concatenate([wq, wk, wv], axis=0).T   # (hidden, 3E)
        prep["bqkv"] = jnp.concatenate([bq, bk, bv], axis=0)     # (3E,)
    if wk.shape[1] == wv.shape[1]:
        prep["wkv"] = jnp.concatenate([wk, wv], axis=0).T        # (hidden, 2E)
        prep["bkv"] = jnp.concatenate([bk, bv], axis=0)          # (2E,)
    if "wo_w" in params:
        prep["wo"] = params["wo_w"].T
        prep["bo"] = params["wo_b"]
    return prep


# ----------------------------------------------------------------------------
# Module wrapper (glue: reshapes / transposes in plain JAX)
# ----------------------------------------------------------------------------
def multi_head_attention(query, key, value, prep, num_heads, mask=None):
    B, Qs, _ = query.shape
    _, Ks, _ = key.shape
    E = prep["embed_dim"]
    assert E % num_heads == 0
    d = E // num_heads

    if query is key and key is value and "wqkv" in prep:
        # Self-attention: one fused x @ [Wq|Wk|Wv] pass (single HBM read of x).
        qkv = linear(query.reshape(B * Qs, -1), prep["wqkv"], prep["bqkv"])
        Q = qkv[:, :E].reshape(B, Qs, E)
        K = qkv[:, E:2 * E].reshape(B, Ks, E)
        V = qkv[:, 2 * E:].reshape(B, Ks, E)
    elif key is value and "wkv" in prep:
        # Shared K/V input: fuse the K and V projections.
        Q = linear(query.reshape(B * Qs, -1), prep["wq"], prep["bq"]).reshape(B, Qs, E)
        kv = linear(key.reshape(B * Ks, -1), prep["wkv"], prep["bkv"])
        K = kv[:, :E].reshape(B, Ks, E)
        V = kv[:, E:].reshape(B, Ks, E)
    else:
        Q = linear(query.reshape(B * Qs, -1), prep["wq"], prep["bq"]).reshape(B, Qs, E)
        K = linear(key.reshape(B * Ks, -1), prep["wk"], prep["bk"]).reshape(B, Ks, E)
        V = linear(value.reshape(B * Ks, -1), prep["wv"], prep["bv"]).reshape(B, Ks, E)

    # (B, S, H, d) -> (B, H, S, d) -> (B*H, S, d): heads-leading so the attention
    # kernel can batch a whole head group per grid step (leading batch dim on MXU).
    Q = Q.reshape(B, Qs, num_heads, d).transpose(0, 2, 1, 3).reshape(B * num_heads, Qs, d)
    K = K.reshape(B, Ks, num_heads, d).transpose(0, 2, 1, 3).reshape(B * num_heads, Ks, d)
    V = V.reshape(B, Ks, num_heads, d).transpose(0, 2, 1, 3).reshape(B * num_heads, Ks, d)

    out = scaled_dot_product_attention(Q, K, V, mask, d)

    # (B*H, Qs, d) -> (B, Qs, H*d)
    out = out.reshape(B, num_heads, Qs, d).transpose(0, 2, 1, 3).reshape(B, Qs, E)

    if "wo" in prep:
        out_dim = prep["wo"].shape[1]
        out = linear(out.reshape(B * Qs, E), prep["wo"], prep["bo"]).reshape(B, Qs, out_dim)
    return out


# ----------------------------------------------------------------------------
# Pure-JAX reference for validation (torch semantics, high-precision matmuls)
# ----------------------------------------------------------------------------
def multi_head_attention_ref(query, key, value, params, num_heads, mask=None):
    B, Qs, _ = query.shape
    _, Ks, _ = key.shape
    E = params["wq_w"].shape[0]
    d = E // num_heads
    hp = jax.lax.Precision.HIGHEST

    def lin(x, w, b):
        return jnp.matmul(x, w.T, precision=hp) + b

    Q = lin(query, params["wq_w"], params["wq_b"]).reshape(B, Qs, num_heads, d).transpose(0, 2, 1, 3)
    K = lin(key, params["wk_w"], params["wk_b"]).reshape(B, Ks, num_heads, d).transpose(0, 2, 1, 3)
    V = lin(value, params["wv_w"], params["wv_b"]).reshape(B, Ks, num_heads, d).transpose(0, 2, 1, 3)
    s = jnp.einsum("bhqd,bhkd->bhqk", Q, K, precision=hp) / (d ** 0.5)
    if mask is None:
        mask = jnp.ones((Qs, Ks), jnp.float32)
    s = jnp.where(mask[None, None] != 0, s, -1e9)
    p = jax.nn.softmax(s, axis=-1)
    o = jnp.einsum("bhqk,bhkd->bhqd", p, V, precision=hp)
    o = o.transpose(0, 2, 1, 3).reshape(B, Qs, E)
    if "wo_w" in params:
        o = lin(o, params["wo_w"], params["wo_b"])
    return o


# ----------------------------------------------------------------------------
# Deterministic parameter init (PyTorch Linear-style uniform, (out,in) layout)
# ----------------------------------------------------------------------------
def init_params(key, hidden, embed_dim, output_dim=None):
    ks = jax.random.split(key, 8)

    def lin_init(kw, kb, out_f, in_f):
        bound = 1.0 / (in_f ** 0.5)
        w = jax.random.uniform(kw, (out_f, in_f), jnp.float32, -bound, bound)
        b = jax.random.uniform(kb, (out_f,), jnp.float32, -bound, bound)
        return w, b

    p = {}
    p["wq_w"], p["wq_b"] = lin_init(ks[0], ks[1], embed_dim, hidden)
    p["wk_w"], p["wk_b"] = lin_init(ks[2], ks[3], embed_dim, hidden)
    p["wv_w"], p["wv_b"] = lin_init(ks[4], ks[5], embed_dim, hidden)
    if output_dim is not None:
        p["wo_w"], p["wo_b"] = lin_init(ks[6], ks[7], output_dim, embed_dim)
    return p


if __name__ == "__main__":
    # Small shapes: batch=2, Qseq=8, Kseq=8, hidden=32, heads=4, embed=32, out=16
    B, Qs, Ks, hidden = 2, 8, 8, 32
    num_heads, embed_dim, output_dim = 4, 32, 16

    root = jax.random.PRNGKey(0)
    k_q, k_k, k_v, k_p = jax.random.split(root, 4)
    query = jax.random.normal(k_q, (B, Qs, hidden), jnp.float32)
    key_ = jax.random.normal(k_k, (B, Ks, hidden), jnp.float32)
    value = jax.random.normal(k_v, (B, Ks, hidden), jnp.float32)

    params = init_params(k_p, hidden, embed_dim, output_dim)
    prep = prepare_params(params)

    # 1) Cross-attention, no mask (separate projections, unmasked kernel path).
    out = jax.block_until_ready(
        multi_head_attention(query, key_, value, prep, num_heads))
    ref = multi_head_attention_ref(query, key_, value, params, num_heads)
    np.testing.assert_allclose(np.asarray(out), np.asarray(ref), rtol=1e-3, atol=1e-3)
    assert out.shape == (B, Qs, output_dim)

    # 2) Self-attention with a causal mask (fused QKV projection, masked kernel path).
    causal = jnp.tril(jnp.ones((Qs, Qs), jnp.float32))
    out_sa = jax.block_until_ready(
        multi_head_attention(query, query, query, prep, num_heads, mask=causal))
    ref_sa = multi_head_attention_ref(query, query, query, params, num_heads, mask=causal)
    np.testing.assert_allclose(np.asarray(out_sa), np.asarray(ref_sa), rtol=1e-3, atol=1e-3)
    assert out_sa.shape == (B, Qs, output_dim)

    print("KERNEL_OK")
</pallas_src>

<mosaic_0001>
module attributes {stable_mosaic.version = 11 : i64} {
  func.func @_linear_kernel(%arg0: i32, %arg1: i32, %arg2: i32, %arg3: memref<16x32xf32, #tpu.memory_space<vmem>>, %arg4: memref<32x32xf32, #tpu.memory_space<vmem>>, %arg5: memref<1x32xf32, #tpu.memory_space<vmem>>, %arg6: memref<16x32xf32, #tpu.memory_space<vmem>>, %arg7: memref<16x32xf32, #tpu.memory_space<vmem>>) attributes {dimension_semantics = [#tpu.dimension_semantics<parallel>, #tpu.dimension_semantics<parallel>, #tpu.dimension_semantics<arbitrary>], iteration_bounds = array<i64: 1, 1, 1>, scalar_prefetch = 0 : i64, scratch_operands = 1 : i64, tpu.core_type = #tpu.core_type<tc>, window_params = [{transform_indices = @transform_0, window_bounds = array<i64: 16, 32>}, {transform_indices = @transform_1, window_bounds = array<i64: 32, 32>}, {transform_indices = @transform_2, window_bounds = array<i64: 1, 32>}, {transform_indices = @transform_3, window_bounds = array<i64: 16, 32>}]} {
    %c0_i32 = arith.constant 0 : i32
    %0 = arith.cmpi eq, %arg2, %c0_i32 : i32
    %1 = arith.extui %0 : i1 to i32
    %c0_i32_0 = arith.constant 0 : i32
    %2 = arith.cmpi ne, %1, %c0_i32_0 : i32
    scf.if %2 {
      %cst_10 = arith.constant 0.000000e+00 : f32
      %12 = vector.broadcast %cst_10 : f32 to vector<16x32xf32>
      %c0_11 = arith.constant 0 : index
      %c0_12 = arith.constant 0 : index
      %13 = vector.load %arg7[%c0_11, %c0_12] : memref<16x32xf32, #tpu.memory_space<vmem>>, vector<16x32xf32>
      tpu.vector_store %arg7[%c0_11, %c0_12], %12 {strides = array<i32>} : memref<16x32xf32, #tpu.memory_space<vmem>>, vector<16x32xf32>,
    } else {
    }
    %c0 = arith.constant 0 : index
    %c0_1 = arith.constant 0 : index
    %3 = vector.load %arg7[%c0, %c0_1] : memref<16x32xf32, #tpu.memory_space<vmem>>, vector<16x32xf32>
    %c0_2 = arith.constant 0 : index
    %c0_3 = arith.constant 0 : index
    %4 = vector.load %arg3[%c0_2, %c0_3] : memref<16x32xf32, #tpu.memory_space<vmem>>, vector<16x32xf32>
    %c0_4 = arith.constant 0 : index
    %c0_5 = arith.constant 0 : index
    %5 = vector.load %arg4[%c0_4, %c0_5] : memref<32x32xf32, #tpu.memory_space<vmem>>, vector<32x32xf32>
    %cst = arith.constant dense<0.000000e+00> : vector<16x32xf32>
    %6 = tpu.matmul %4, %5, %cst {dimension_numbers = #tpu.dot_dimension_numbers<[1], [0], [0], [1], [0, 0, 1, 1], [], []>} : vector<16x32xf32>, vector<32x32xf32>, vector<16x32xf32> -> vector<16x32xf32>
    %7 = arith.addf %3, %6 : vector<16x32xf32>
    %c0_6 = arith.constant 0 : index
    %c0_7 = arith.constant 0 : index
    %8 = vector.load %arg7[%c0_6, %c0_7] : memref<16x32xf32, #tpu.memory_space<vmem>>, vector<16x32xf32>
    tpu.vector_store %arg7[%c0_6, %c0_7], %7 {strides = array<i32>} : memref<16x32xf32, #tpu.memory_space<vmem>>, vector<16x32xf32>,
    %c0_i32_8 = arith.constant 0 : i32
    %9 = arith.cmpi eq, %arg2, %c0_i32_8 : i32
    %10 = arith.extui %9 : i1 to i32
    %c0_i32_9 = arith.constant 0 : i32
    %11 = arith.cmpi ne, %10, %c0_i32_9 : i32
    scf.if %11 {
      %c0_10 = arith.constant 0 : index
      %c0_11 = arith.constant 0 : index
      %12 = vector.load %arg7[%c0_10, %c0_11] : memref<16x32xf32, #tpu.memory_space<vmem>>, vector<16x32xf32>
      %c0_12 = arith.constant 0 : index
      %c0_13 = arith.constant 0 : index
      %13 = vector.load %arg5[%c0_12, %c0_13] : memref<1x32xf32, #tpu.memory_space<vmem>>, vector<1x32xf32>
      %14 = vector.broadcast %13 : vector<1x32xf32> to vector<16x32xf32>
      %15 = arith.addf %12, %14 : vector<16x32xf32>
      %c0_14 = arith.constant 0 : index
      %c0_15 = arith.constant 0 : index
      %16 = vector.load %arg6[%c0_14, %c0_15] : memref<16x32xf32, #tpu.memory_space<vmem>>, vector<16x32xf32>
      tpu.vector_store %arg6[%c0_14, %c0_15], %15 {strides = array<i32>} : memref<16x32xf32, #tpu.memory_space<vmem>>, vector<16x32xf32>,
    } else {
    }
    return
  }
  func.func @transform_0(%arg0: i32, %arg1: i32, %arg2: i32) -> (i32, i32) {
    %c0_i32 = arith.constant 0 : i32
    return %arg0, %arg2 : i32, i32
  }
  func.func @transform_1(%arg0: i32, %arg1: i32, %arg2: i32) -> (i32, i32) {
    %c0_i32 = arith.constant 0 : i32
    return %arg2, %arg1 : i32, i32
  }
  func.func @transform_2(%arg0: i32, %arg1: i32, %arg2: i32) -> (i32, i32) {
    %c0_i32 = arith.constant 0 : i32
    %c0_i32_0 = arith.constant 0 : i32
    return %c0_i32, %arg1 : i32, i32
  }
  func.func @transform_3(%arg0: i32, %arg1: i32, %arg2: i32) -> (i32, i32) {
    %c0_i32 = arith.constant 0 : i32
    return %arg0, %arg1 : i32, i32
  }
}

</mosaic_0001>

<llo_original>
// kernel: tpu_custom_call.1
$region0: #{tpu_custom_call.1}
  #allocation0 [shape = 'u32[]', space=smem, size = 0x4, offset = 0x4, fixed_abs, tag = 'smem constant byte address 0x4 - core index']
  #allocation1 [shape = 'u32[144,128]{1,0:T(1,128)}', space=vmem, size = 0x12000, scoped, tag = 'internal scratch']
  #allocation2 [shape = 'f32[16,32]{1,0:T(8,128)}', space=vmem, size = 0x2000, scoped, tag = 'scratch operand']
  %s0 = inlined_call_operand.hbm [shape: f32[16,32], index: 0, kind: input, shape index: {}]
  %s1 = inlined_call_operand.hbm [shape: f32[32,32], index: 1, kind: input, shape index: {}]
  %s2 = inlined_call_operand.vmem [shape: f32[1,32], index: 2, kind: input, shape index: {}]
  %s3 = inlined_call_operand.hbm [shape: f32[16,32], index: 3, kind: output, shape index: {}]
  %s4 = sld [smem:[#allocation0]]
  $region38: #{tpu_custom_call.1} parent=0
    _
  %s6 = ssub.s32 1, %s4
  %s7 = scalar_select 0, %s6, %s4
  $region1: #{tpu_custom_call.1} parent=0
    #allocation3 [shape = 'u8[8192]{0}', space=vmem, size = 0x2000, scoped, tag = 'input window, operand 0, single buffered']
    #allocation4 [shape = 's32[1]{0}', space=sflag, size = 0x4, scoped, tag = 'scoped memory for tpu_custom_call.1']
    #allocation5 [shape = 's32[1]{0}', space=sflag, size = 0x4, scoped, tag = 'scoped memory for tpu_custom_call.1']
    #allocation6 [shape = 'u8[16384]{0}', space=vmem, size = 0x4000, scoped, tag = 'input window, operand 1, single buffered']
    #allocation7 [shape = 's32[1]{0}', space=sflag, size = 0x4, scoped, tag = 'scoped memory for tpu_custom_call.1']
    #allocation8 [shape = 'u8[8192]{0}', space=vmem, size = 0x2000, scoped, tag = 'output window, operand 0, single buffered']
    %8 = vsyncpa [#allocation4], 0
    %9 = vsyncpa [#allocation7], 0
    %10 = vsyncpa [#allocation5], 0
    // Predicated region
    $region2: #{tpu_custom_call.1} parent=1 // pred_check
      _
    $region3: #{tpu_custom_call.1} parent=1 // pred_check_branch
      %12 = sbr.rel (0) target = $region5
    $region4: #{tpu_custom_call.1} parent=1 // pred_region
      %s14 = ssub.s32 256, 256
      %15 = vsyncadd [#allocation4], %s14
      %s16 = sshll.u32 [#allocation3], 4
      %s17 = int_to_ptr.vmem [resolvable:$true] %s16
      %22 = dma.hbm_to_vmem [thread:$0]  %s0, 256, %s17, [#allocation4], 128, 128, 8
    $region5: #{tpu_custom_call.1} parent=1 // pred_fallthru
      _
    // Predicated region
    $region6: #{tpu_custom_call.1} parent=1 // pred_check
      _
    $region7: #{tpu_custom_call.1} parent=1 // pred_check_branch
      %24 = sbr.rel (0) target = $region9
    $region8: #{tpu_custom_call.1} parent=1 // pred_region
      %s26 = ssub.s32 512, 512
      %27 = vsyncadd [#allocation7], %s26
      %s28 = sshll.u32 [#allocation6], 4
      %s29 = int_to_ptr.vmem [resolvable:$true] %s28
      %34 = dma.hbm_to_vmem [thread:$0]  %s1, 512, %s29, [#allocation7], 128, 128, 8
    $region9: #{tpu_custom_call.1} parent=1 // pred_fallthru
      _
    // Predicated region
    $region10: #{tpu_custom_call.1} parent=1 // pred_check
      _
    $region11: #{tpu_custom_call.1} parent=1 // pred_check_branch
      %36 = sbr.rel (0) target = $region13
    $region12: #{tpu_custom_call.1} parent=1 // pred_region
      _
    $region13: #{tpu_custom_call.1} parent=1 // pred_fallthru
      _
    // Predicated region
    $region14: #{tpu_custom_call.1} parent=1 // pred_check
      _
    $region15: #{tpu_custom_call.1} parent=1 // pred_check_branch
      %38 = sbr.rel (0) target = $region17
    $region16: #{tpu_custom_call.1} parent=1 // pred_region
      %39 = dma.done [#allocation4], 256
    $region17: #{tpu_custom_call.1} parent=1 // pred_fallthru
      _
    // Predicated region
    $region18: #{tpu_custom_call.1} parent=1 // pred_check
      _
    $region19: #{tpu_custom_call.1} parent=1 // pred_check_branch
      %41 = sbr.rel (0) target = $region21
    $region20: #{tpu_custom_call.1} parent=1 // pred_region
      %42 = dma.done [#allocation7], 512
    $region21: #{tpu_custom_call.1} parent=1 // pred_fallthru
      _
    %p43 = scmp.eq.s32.totalorder 0, 0
    // Predicated region
    $region22: #{tpu_custom_call.1} parent=1 // pred_check
      %p44 = pneg %p43
    $region23: #{tpu_custom_call.1} parent=1 // pred_check_branch
      %46 = sbr.rel (%p44) target = $region25
    $region24: #{tpu_custom_call.1} parent=1 // pred_region
      %vm47 = vcmask 261120
      %48 = vst.msk [vmem:[#allocation2] sm:$0xff] %vm47, 0.0
      %49 = vst.msk [vmem:[#allocation2 + $0x8] sm:$0xff] %vm47, 0.0
    $region25: #{tpu_custom_call.1} parent=1 // pred_fallthru
      _
    %v50 = vld [vmem:[#allocation2] sm:$0xff]
    %v51 = vld [vmem:[#allocation2 + $0x8] sm:$0xff]
    %v52 = vld [vmem:[#allocation3] sm:$0xff]
    %v53 = vld [vmem:[#allocation3 + $0x8] sm:$0xff]
    %v54 = vld [vmem:[#allocation6] sm:$0xff]
    %v55 = vld [vmem:[#allocation6 + $0x8] sm:$0xff]
    %v56 = vld [vmem:[#allocation6 + $0x10] sm:$0xff]
    %v57 = vld [vmem:[#allocation6 + $0x18] sm:$0xff]
    %vm58 = vcmask 261120
    %v60 = vsel %vm58, %v52, 0
    %v63 = vsel %vm58, %v53, 0
    %65 = vmatprep.subr.mxu0 0.0
    %66 = vmatpush1.msra.mxu0 %v54
    %67 = vmatprep.subr.mxu0 0.0
    %68 = vmatpush1.msra.mxu0 %v55
    %69 = vmatprep.subr.mxu0 0.0
    %70 = vmatpush1.msra.mxu0 %v56
    %71 = vmatprep.subr.mxu0 0.0
    %72 = vmatpush1.msra.mxu0 %v57
    %73 = vmatprep.subr.mxu0 0.0
    %74 = vmatpush1.msra.mxu0 0.0
    %75 = vmatprep.subr.mxu0 0.0
    %76 = vmatpush1.msra.mxu0 0.0
    %77 = vmatprep.subr.mxu0 0.0
    %78 = vmatpush1.msra.mxu0 0.0
    %79 = vmatprep.subr.mxu0 0.0
    %80 = vmatpush1.msra.mxu0 0.0
    %81 = vmatprep.subr.mxu0 0.0
    %82 = vmatpush1.msra.mxu0 0.0
    %83 = vmatprep.subr.mxu0 0.0
    %84 = vmatpush1.msra.mxu0 0.0
    %85 = vmatprep.subr.mxu0 0.0
    %86 = vmatpush1.msra.mxu0 0.0
    %87 = vmatprep.subr.mxu0 0.0
    %88 = vmatpush1.msra.mxu0 0.0
    %89 = vmatprep.subr.mxu0 0.0
    %90 = vmatpush1.msra.mxu0 0.0
    %91 = vmatprep.subr.mxu0 0.0
    %92 = vmatpush1.msra.mxu0 0.0
    %93 = vmatprep.subr.mxu0 0.0
    %94 = vmatpush1.msra.mxu0 0.0
    %95 = vmatprep.subr.mxu0 0.0
    %96 = vmatpush1.msra.mxu0 0.0
    %97 = vmatprep.subr.mxu0 0.0
    %98 = vmatpush1.msra.mxu0 0.0
    %99 = vmatprep.subr.mxu0 0.0
    %100 = vmatpush1.msra.mxu0 0.0
    %101 = vmatprep.subr.mxu0 0.0
    %102 = vmatpush1.msra.mxu0 0.0
    %103 = vmatprep.subr.mxu0 0.0
    %104 = vmatpush1.msra.mxu0 0.0
    %105 = vmatprep.subr.mxu0 0.0
    %106 = vmatpush1.msra.mxu0 0.0
    %107 = vmatprep.subr.mxu0 0.0
    %108 = vmatpush1.msra.mxu0 0.0
    %109 = vmatprep.subr.mxu0 0.0
    %110 = vmatpush1.msra.mxu0 0.0
    %111 = vmatprep.subr.mxu0 0.0
    %112 = vmatpush1.msra.mxu0 0.0
    %113 = vmatprep.subr.mxu0 0.0
    %114 = vmatpush1.msra.mxu0 0.0
    %115 = vmatprep.subr.mxu0 0.0
    %116 = vmatpush1.msra.mxu0 0.0
    %117 = vmatprep.subr.mxu0 0.0
    %118 = vmatpush1.msra.mxu0 0.0
    %119 = vmatprep.subr.mxu0 0.0
    %120 = vmatpush1.msra.mxu0 0.0
    %121 = vmatprep.subr.mxu0 0.0
    %122 = vmatpush1.msra.mxu0 0.0
    %123 = vmatprep.subr.mxu0 0.0
    %124 = vmatpush1.msra.mxu0 0.0
    %125 = vmatprep.subr.mxu0 0.0
    %126 = vmatpush1.msra.mxu0 0.0
    %127 = vmatprep.subr.mxu0 0.0
    %128 = vmatpush1.msra.mxu0 0.0
    %129 = vmatprep.mubr.f32.mxu0 0.0
    %130 = vmatmul.mubr.f32.gmra.mrb[0].mxu0 %v60
    %v131 = vpop.f32.mrb[0].mxu0
    %v132 = vadd.f32 0.0, %v131
    %v133 = vpop.f32.mrb[0].mxu0
    %134 = vmatprep.mubr.f32.mxu0 0.0
    %135 = vmatmul.mubr.f32.gmra.mrb[0].mxu0 %v63
    %v136 = vpop.f32.mrb[0].mxu0
    %v137 = vadd.f32 0.0, %v136
    %v138 = vpop.f32.mrb[0].mxu0
    %139 = vdwg.mxu0
    %v140 = vadd.f32 %v50, %v132
    %v141 = vadd.f32 %v51, %v137
    %142 = vst.msk [vmem:[#allocation2] sm:$0xff] %vm58, %v140
    %143 = vst.msk [vmem:[#allocation2 + $0x8] sm:$0xff] %vm58, %v141
    // Predicated region
    $region26: #{tpu_custom_call.1} parent=1 // pred_check
      %p144 = pneg %p43
    $region27: #{tpu_custom_call.1} parent=1 // pred_check_branch
      %146 = sbr.rel (%p144) target = $region29
    $region28: #{tpu_custom_call.1} parent=1 // pred_region
      %v147 = vld [vmem:[#allocation2] sm:$0xff]
      %v148 = vld [vmem:[#allocation2 + $0x8] sm:$0xff]
      %v149 = vld [vmem:[%s2] sm:$0x1]
      %v151 = vlaneseq
      %v152 = vshrl.u32 %v151, 7
      %v153 = vsub.s32 0, %v152
      %v154 = vrot.slane %v149, %v153
      %v156 = vadd.f32 %v147, %v154
      %v157 = vadd.f32 %v148, %v154
      %158 = vst.msk [vmem:[#allocation8] sm:$0xff] %vm58, %v156
      %159 = vst.msk [vmem:[#allocation8 + $0x8] sm:$0xff] %vm58, %v157
    $region29: #{tpu_custom_call.1} parent=1 // pred_fallthru
      _
    // Predicated region
    $region30: #{tpu_custom_call.1} parent=1 // pred_check
      _
    $region31: #{tpu_custom_call.1} parent=1 // pred_check_branch
      %161 = sbr.rel (0) target = $region33
    $region32: #{tpu_custom_call.1} parent=1 // pred_region
      %s163 = ssub.s32 256, 256
      %164 = vsyncadd [#allocation5], %s163
      %s165 = sshll.u32 [#allocation8], 4
      %s166 = int_to_ptr.vmem [resolvable:$true] %s165
      %171 = dma.vmem_to_hbm [thread:$0]  %s166, 256, %s3, [#allocation5], 128, 128, 8
    $region33: #{tpu_custom_call.1} parent=1 // pred_fallthru
      _
    // Predicated region
    $region34: #{tpu_custom_call.1} parent=1 // pred_check
      _
    $region35: #{tpu_custom_call.1} parent=1 // pred_check_branch
      %173 = sbr.rel (0) target = $region37
    $region36: #{tpu_custom_call.1} parent=1 // pred_region
      %174 = dma.done [#allocation5], 256
    $region37: #{tpu_custom_call.1} parent=1 // pred_fallthru
      _
    %175 = vsyncpa [#allocation4], 1
    %176 = vsyncpa [#allocation7], 1
    %177 = vsyncpa [#allocation5], 1

</llo_original>
